<compile_context>
chip_gen: v7x
topology: tpu7x:2x2x1
jax: 0.10.0
libtpu: 0.0.40
codegen_flags: <defaults>
</compile_context>

<pallas_src>
import math

import jax
import jax.numpy as jnp
from jax.experimental import pallas as pl
from jax.experimental.pallas import tpu as pltpu


def _fm_kernel(x_ref, w_ref, s_ref, b_ref, o_ref):
    # x_ref : (TB, n)      current batch tile
    # w_ref : (n, 1+k)     [W_lin^T | V^T]          (resident across the grid)
    # s_ref : (n, 1)       -0.5 * sum_j (V_j)^2     (resident across the grid)
    # b_ref : (1, 1)       linear bias
    # o_ref : (TB, 1)
    x = x_ref[...]                                                   # (TB, n)

    # Fused projection: column 0 = linear part (pre-bias), cols 1..k = x @ V^T.
    t = jnp.dot(x, w_ref[...], preferred_element_type=jnp.float32)  # (TB, 1+k)

    # x^2 through the collapsed (and pre-scaled by -0.5) interaction-2 weight.
    x2 = (x.astype(jnp.float32) * x.astype(jnp.float32)).astype(x.dtype)
    neg_half_i2 = jnp.dot(x2, s_ref[...],
                          preferred_element_type=jnp.float32)        # (TB, 1)

    lin = t[:, :1] + b_ref[...]                                       # (TB, 1)
    xv = t[:, 1:]                                                     # (TB, k)
    out = lin + 0.5 * jnp.sum(xv * xv, axis=-1, keepdims=True) + neg_half_i2
    o_ref[...] = out.astype(o_ref.dtype)


def _pick_batch_tile(batch):
    """Biggest tile that divides the batch and respects the (8, 128) rule."""
    if batch <= 1024:
        return batch                      # block == full dim is always legal
    for tb in (1024, 512, 256, 128, 64, 32, 16, 8):
        if batch % tb == 0:
            return tb
    return batch


def fm_forward(x, w_lin, b_lin, v):
    """FM forward.  x: (B, n); w_lin: (1, n); b_lin: (1,) or None; v: (k, n)."""
    B, n = x.shape
    k = v.shape[0]

    # One-time parameter repacking (cheap; constant-folded under jit).
    w_fused = jnp.concatenate([w_lin.T, v.T], axis=1).astype(x.dtype)  # (n, 1+k)
    s = (-0.5 * jnp.sum(v.astype(jnp.float32) ** 2, axis=0,
                        keepdims=True).T).astype(x.dtype)              # (n, 1)
    b = (jnp.zeros((1, 1), jnp.float32) if b_lin is None
         else b_lin.reshape(1, 1).astype(jnp.float32))

    tb = _pick_batch_tile(B)
    grid = (B // tb,)
    full = lambda shape: pl.BlockSpec(shape, lambda i: (0,) * len(shape))

    return pl.pallas_call(
        _fm_kernel,
        out_shape=jax.ShapeDtypeStruct((B, 1), x.dtype),
        grid_spec=pltpu.PrefetchScalarGridSpec(
            num_scalar_prefetch=0,
            grid=grid,
            in_specs=[
                pl.BlockSpec((tb, n), lambda i: (i, 0)),   # x tile (per batch chunk)
                full((n, 1 + k)),                          # fused [W_lin^T | V^T]
                full((n, 1)),                              # -0.5 * colsum(V^2)
                full((1, 1)),                              # bias
            ],
            out_specs=pl.BlockSpec((tb, 1), lambda i: (i, 0)),
        ),
        compiler_params=pltpu.CompilerParams(
            dimension_semantics=("parallel",)),
    )(x, w_fused, s, b)


def init_fm_params(key, n, k, bias=True, dtype=jnp.float32):
    """Matches nn.Linear default init and xavier_uniform_ for v."""
    k_w, k_b, k_v = jax.random.split(key, 3)
    bound = 1.0 / math.sqrt(n)
    w_lin = jax.random.uniform(k_w, (1, n), dtype, minval=-bound, maxval=bound)
    b_lin = (jax.random.uniform(k_b, (1,), dtype, minval=-bound, maxval=bound)
             if bias else None)
    xbound = math.sqrt(6.0 / (n + k))                     # xavier_uniform_
    v = jax.random.uniform(k_v, (k, n), dtype, minval=-xbound, maxval=xbound)
    return w_lin, b_lin, v


def _reference(x, w_lin, b_lin, v):
    """Pure-JAX reference mirroring the PyTorch forward exactly."""
    lin = x @ w_lin.T + (0.0 if b_lin is None else b_lin)
    i1 = x @ v.T
    i2 = (x ** 2) @ (v ** 2).T
    return lin + 0.5 * jnp.sum(i1 ** 2 - i2, axis=1, keepdims=True)


if __name__ == "__main__":
    B, n, k = 16, 32, 8

    key = jax.random.PRNGKey(0)
    kx, kp = jax.random.split(key)
    x = jax.random.normal(kx, (B, n), dtype=jnp.float32)
    w_lin, b_lin, v = init_fm_params(kp, n, k, bias=True)

    out = fm_forward(x, w_lin, b_lin, v)
    out = jax.block_until_ready(out)

    ref = _reference(x, w_lin, b_lin, v)
    assert out.shape == (B, 1)
    assert jnp.allclose(out, ref, atol=1e-5, rtol=1e-5), "mismatch vs reference"

    print("KERNEL_OK")
</pallas_src>

<mosaic_0001>
module attributes {stable_mosaic.version = 11 : i64} {
  func.func @_fm_kernel(%arg0: i32, %arg1: memref<16x32xf32, #tpu.memory_space<vmem>>, %arg2: memref<32x9xf32, #tpu.memory_space<vmem>>, %arg3: memref<32x1xf32, #tpu.memory_space<vmem>>, %arg4: memref<1x1xf32, #tpu.memory_space<vmem>>, %arg5: memref<16x1xf32, #tpu.memory_space<vmem>>) attributes {dimension_semantics = [#tpu.dimension_semantics<parallel>], iteration_bounds = array<i64: 1>, scalar_prefetch = 0 : i64, scratch_operands = 0 : i64, tpu.core_type = #tpu.core_type<tc>, window_params = [{transform_indices = @transform_0, window_bounds = array<i64: 16, 32>}, {pipeline_mode = #tpu.pipeline_mode<synchronous>, transform_indices = @transform_1, window_bounds = array<i64: 32, 9>}, {pipeline_mode = #tpu.pipeline_mode<synchronous>, transform_indices = @transform_2, window_bounds = array<i64: 32, 1>}, {pipeline_mode = #tpu.pipeline_mode<synchronous>, transform_indices = @transform_3, window_bounds = array<i64: 1, 1>}, {transform_indices = @transform_4, window_bounds = array<i64: 16, 1>}]} {
    %c0 = arith.constant 0 : index
    %c0_0 = arith.constant 0 : index
    %0 = vector.load %arg1[%c0, %c0_0] : memref<16x32xf32, #tpu.memory_space<vmem>>, vector<16x32xf32>
    %c0_1 = arith.constant 0 : index
    %c0_2 = arith.constant 0 : index
    %1 = vector.load %arg2[%c0_1, %c0_2] : memref<32x9xf32, #tpu.memory_space<vmem>>, vector<32x9xf32>
    %cst = arith.constant dense<0.000000e+00> : vector<16x9xf32>
    %2 = tpu.matmul %0, %1, %cst {dimension_numbers = #tpu.dot_dimension_numbers<[1], [0], [0], [1], [0, 0, 1, 1], [], []>} : vector<16x32xf32>, vector<32x9xf32>, vector<16x9xf32> -> vector<16x9xf32>
    %3 = arith.mulf %0, %0 : vector<16x32xf32>
    %c0_3 = arith.constant 0 : index
    %c0_4 = arith.constant 0 : index
    %4 = vector.load %arg3[%c0_3, %c0_4] : memref<32x1xf32, #tpu.memory_space<vmem>>, vector<32x1xf32>
    %cst_5 = arith.constant dense<0.000000e+00> : vector<16x1xf32>
    %5 = tpu.matmul %3, %4, %cst_5 {dimension_numbers = #tpu.dot_dimension_numbers<[1], [0], [0], [1], [0, 0, 1, 1], [], []>} : vector<16x32xf32>, vector<32x1xf32>, vector<16x1xf32> -> vector<16x1xf32>
    %6 = vector.extract_strided_slice %2 {offsets = [0, 0], sizes = [16, 1], strides = [1, 1]} : vector<16x9xf32> to vector<16x1xf32>
    %c0_6 = arith.constant 0 : index
    %c0_7 = arith.constant 0 : index
    %7 = vector.load %arg4[%c0_6, %c0_7] : memref<1x1xf32, #tpu.memory_space<vmem>>, vector<1x1xf32>
    %8 = vector.broadcast %7 : vector<1x1xf32> to vector<16x1xf32>
    %9 = arith.addf %6, %8 : vector<16x1xf32>
    %10 = vector.extract_strided_slice %2 {offsets = [0, 1], sizes = [16, 8], strides = [1, 1]} : vector<16x9xf32> to vector<16x8xf32>
    %11 = arith.mulf %10, %10 : vector<16x8xf32>
    %cst_8 = arith.constant dense<0.000000e+00> : vector<16xf32>
    %12 = vector.multi_reduction <add>, %11, %cst_8 [1] : vector<16x8xf32> to vector<16xf32>
    %13 = vector.shape_cast %12 : vector<16xf32> to vector<16x1xf32>
    %cst_9 = arith.constant 5.000000e-01 : f32
    %14 = vector.broadcast %cst_9 : f32 to vector<16x1xf32>
    %15 = arith.mulf %14, %13 : vector<16x1xf32>
    %16 = arith.addf %9, %15 : vector<16x1xf32>
    %17 = arith.addf %16, %5 : vector<16x1xf32>
    %c0_10 = arith.constant 0 : index
    %c0_11 = arith.constant 0 : index
    %18 = vector.load %arg5[%c0_10, %c0_11] : memref<16x1xf32, #tpu.memory_space<vmem>>, vector<16x1xf32>
    tpu.vector_store %arg5[%c0_10, %c0_11], %17 {strides = array<i32>} : memref<16x1xf32, #tpu.memory_space<vmem>>, vector<16x1xf32>,
    return
  }
  func.func @transform_0(%arg0: i32) -> (i32, i32) {
    %c0_i32 = arith.constant 0 : i32
    %c0_i32_0 = arith.constant 0 : i32
    return %arg0, %c0_i32 : i32, i32
  }
  func.func @transform_1(%arg0: i32) -> (i32, i32) {
    %c0_i32 = arith.constant 0 : i32
    %c0_i32_0 = arith.constant 0 : i32
    %c0_i32_1 = arith.constant 0 : i32
    return %c0_i32, %c0_i32_0 : i32, i32
  }
  func.func @transform_2(%arg0: i32) -> (i32, i32) {
    %c0_i32 = arith.constant 0 : i32
    %c0_i32_0 = arith.constant 0 : i32
    %c0_i32_1 = arith.constant 0 : i32
    return %c0_i32, %c0_i32_0 : i32, i32
  }
  func.func @transform_3(%arg0: i32) -> (i32, i32) {
    %c0_i32 = arith.constant 0 : i32
    %c0_i32_0 = arith.constant 0 : i32
    %c0_i32_1 = arith.constant 0 : i32
    return %c0_i32, %c0_i32_0 : i32, i32
  }
  func.func @transform_4(%arg0: i32) -> (i32, i32) {
    %c0_i32 = arith.constant 0 : i32
    %c0_i32_0 = arith.constant 0 : i32
    return %arg0, %c0_i32 : i32, i32
  }
}

</mosaic_0001>

<llo_original>
// kernel: tpu_custom_call.1
$region0: #{tpu_custom_call.1}
  #allocation0 [shape = 'u32[]', space=smem, size = 0x4, offset = 0x4, fixed_abs, tag = 'smem constant byte address 0x4 - core index']
  #allocation1 [shape = 'u32[144,128]{1,0:T(1,128)}', space=vmem, size = 0x12000, scoped, tag = 'internal scratch']
  #allocation2 [shape = 'f32[1,1]{1,0:T(1,128)S(1)}', space=vmem, size = 0x200, scoped, tag = 'scoped memory for tpu_custom_call.1']
  %s0 = inlined_call_operand.vmem [shape: f32[16,32], index: 0, kind: input, shape index: {}]
  %s1 = inlined_call_operand.vmem [shape: f32[32,9], index: 1, kind: input, shape index: {}]
  %s2 = inlined_call_operand.vmem [shape: f32[32,1], index: 2, kind: input, shape index: {}]
  %s3 = inlined_call_operand.<no memory space> [shape: f32[1,1], index: 3, kind: input, shape index: {}]
  %s4 = inlined_call_operand.vmem [shape: f32[16,1], index: 4, kind: output, shape index: {}]
  %s5 = sld [smem:[#allocation0]]
  $region26: #{tpu_custom_call.1} parent=0
    _
  %s7 = ssub.s32 1, %s5
  %s8 = scalar_select 0, %s7, %s5
  %v9 = vstv %s3
  %10 = vst [vmem:[#allocation2] sm:$0x1] %v9
  // Predicated region
  $region2: #{tpu_custom_call.1} parent=0 // pred_check
    _
  $region3: #{tpu_custom_call.1} parent=0 // pred_check_branch
    %12 = sbr.rel (0) target = $region5
  $region4: #{tpu_custom_call.1} parent=0 // pred_region
    _
  $region5: #{tpu_custom_call.1} parent=0 // pred_fallthru
    _
  // Predicated region
  $region6: #{tpu_custom_call.1} parent=0 // pred_check
    _
  $region7: #{tpu_custom_call.1} parent=0 // pred_check_branch
    %14 = sbr.rel (0) target = $region9
  $region8: #{tpu_custom_call.1} parent=0 // pred_region
    _
  $region9: #{tpu_custom_call.1} parent=0 // pred_fallthru
    _
  // Predicated region
  $region10: #{tpu_custom_call.1} parent=0 // pred_check
    _
  $region11: #{tpu_custom_call.1} parent=0 // pred_check_branch
    %16 = sbr.rel (0) target = $region13
  $region12: #{tpu_custom_call.1} parent=0 // pred_region
    _
  $region13: #{tpu_custom_call.1} parent=0 // pred_fallthru
    _
  // Predicated region
  $region14: #{tpu_custom_call.1} parent=0 // pred_check
    _
  $region15: #{tpu_custom_call.1} parent=0 // pred_check_branch
    %18 = sbr.rel (0) target = $region17
  $region16: #{tpu_custom_call.1} parent=0 // pred_region
    _
  $region17: #{tpu_custom_call.1} parent=0 // pred_fallthru
    _
  %v19 = vld [vmem:[%s0] sm:$0xff]
  %v20 = vld [vmem:[%s0 + $0x8] sm:$0xff]
  %v21 = vld [vmem:[%s1] sm:$0xff]
  %v22 = vld [vmem:[%s1 + $0x8] sm:$0xff]
  %v23 = vld [vmem:[%s1 + $0x10] sm:$0xff]
  %v24 = vld [vmem:[%s1 + $0x18] sm:$0xff]
  %vm25 = vcmask 261120
  %v27 = vsel %vm25, %v19, 0
  %v30 = vsel %vm25, %v20, 0
  %32 = vmatprep.subr.mxu0 0.0
  %33 = vmatpush1.msra.mxu0 %v21
  %34 = vmatprep.subr.mxu0 0.0
  %35 = vmatpush1.msra.mxu0 %v22
  %36 = vmatprep.subr.mxu0 0.0
  %37 = vmatpush1.msra.mxu0 %v23
  %38 = vmatprep.subr.mxu0 0.0
  %39 = vmatpush1.msra.mxu0 %v24
  %40 = vmatprep.subr.mxu0 0.0
  %41 = vmatpush1.msra.mxu0 0.0
  %42 = vmatprep.subr.mxu0 0.0
  %43 = vmatpush1.msra.mxu0 0.0
  %44 = vmatprep.subr.mxu0 0.0
  %45 = vmatpush1.msra.mxu0 0.0
  %46 = vmatprep.subr.mxu0 0.0
  %47 = vmatpush1.msra.mxu0 0.0
  %48 = vmatprep.subr.mxu0 0.0
  %49 = vmatpush1.msra.mxu0 0.0
  %50 = vmatprep.subr.mxu0 0.0
  %51 = vmatpush1.msra.mxu0 0.0
  %52 = vmatprep.subr.mxu0 0.0
  %53 = vmatpush1.msra.mxu0 0.0
  %54 = vmatprep.subr.mxu0 0.0
  %55 = vmatpush1.msra.mxu0 0.0
  %56 = vmatprep.subr.mxu0 0.0
  %57 = vmatpush1.msra.mxu0 0.0
  %58 = vmatprep.subr.mxu0 0.0
  %59 = vmatpush1.msra.mxu0 0.0
  %60 = vmatprep.subr.mxu0 0.0
  %61 = vmatpush1.msra.mxu0 0.0
  %62 = vmatprep.subr.mxu0 0.0
  %63 = vmatpush1.msra.mxu0 0.0
  %64 = vmatprep.subr.mxu0 0.0
  %65 = vmatpush1.msra.mxu0 0.0
  %66 = vmatprep.subr.mxu0 0.0
  %67 = vmatpush1.msra.mxu0 0.0
  %68 = vmatprep.subr.mxu0 0.0
  %69 = vmatpush1.msra.mxu0 0.0
  %70 = vmatprep.subr.mxu0 0.0
  %71 = vmatpush1.msra.mxu0 0.0
  %72 = vmatprep.subr.mxu0 0.0
  %73 = vmatpush1.msra.mxu0 0.0
  %74 = vmatprep.subr.mxu0 0.0
  %75 = vmatpush1.msra.mxu0 0.0
  %76 = vmatprep.subr.mxu0 0.0
  %77 = vmatpush1.msra.mxu0 0.0
  %78 = vmatprep.subr.mxu0 0.0
  %79 = vmatpush1.msra.mxu0 0.0
  %80 = vmatprep.subr.mxu0 0.0
  %81 = vmatpush1.msra.mxu0 0.0
  %82 = vmatprep.subr.mxu0 0.0
  %83 = vmatpush1.msra.mxu0 0.0
  %84 = vmatprep.subr.mxu0 0.0
  %85 = vmatpush1.msra.mxu0 0.0
  %86 = vmatprep.subr.mxu0 0.0
  %87 = vmatpush1.msra.mxu0 0.0
  %88 = vmatprep.subr.mxu0 0.0
  %89 = vmatpush1.msra.mxu0 0.0
  %90 = vmatprep.subr.mxu0 0.0
  %91 = vmatpush1.msra.mxu0 0.0
  %92 = vmatprep.subr.mxu0 0.0
  %93 = vmatpush1.msra.mxu0 0.0
  %94 = vmatprep.subr.mxu0 0.0
  %95 = vmatpush1.msra.mxu0 0.0
  %96 = vmatprep.mubr.f32.mxu0 0.0
  %97 = vmatmul.mubr.f32.gmra.mrb[0].mxu0 %v27
  %v98 = vpop.f32.mrb[0].mxu0
  %v99 = vadd.f32 0.0, %v98
  %v100 = vpop.f32.mrb[0].mxu0
  %101 = vmatprep.mubr.f32.mxu0 0.0
  %102 = vmatmul.mubr.f32.gmra.mrb[0].mxu0 %v30
  %v103 = vpop.f32.mrb[0].mxu0
  %v104 = vadd.f32 0.0, %v103
  %v105 = vpop.f32.mrb[0].mxu0
  %106 = vdwg.mxu0
  %v107 = vmul.f32 %v19, %v19
  %v108 = vmul.f32 %v20, %v20
  %v109 = vld [vmem:[%s2] sm:$0xff]
  %v110 = vld [vmem:[%s2 + $0x8] sm:$0xff]
  %v111 = vld [vmem:[%s2 + $0x10] sm:$0xff]
  %v112 = vld [vmem:[%s2 + $0x18] sm:$0xff]
  %v114 = vsel %vm25, %v107, 0
  %v117 = vsel %vm25, %v108, 0
  %119 = vmatprep.subr.mxu0 0.0
  %120 = vmatpush1.msra.mxu0 %v109
  %121 = vmatprep.subr.mxu0 0.0
  %122 = vmatpush1.msra.mxu0 %v110
  %123 = vmatprep.subr.mxu0 0.0
  %124 = vmatpush1.msra.mxu0 %v111
  %125 = vmatprep.subr.mxu0 0.0
  %126 = vmatpush1.msra.mxu0 %v112
  %127 = vmatprep.subr.mxu0 0.0
  %128 = vmatpush1.msra.mxu0 0.0
  %129 = vmatprep.subr.mxu0 0.0
  %130 = vmatpush1.msra.mxu0 0.0
  %131 = vmatprep.subr.mxu0 0.0
  %132 = vmatpush1.msra.mxu0 0.0
  %133 = vmatprep.subr.mxu0 0.0
  %134 = vmatpush1.msra.mxu0 0.0
  %135 = vmatprep.subr.mxu0 0.0
  %136 = vmatpush1.msra.mxu0 0.0
  %137 = vmatprep.subr.mxu0 0.0
  %138 = vmatpush1.msra.mxu0 0.0
  %139 = vmatprep.subr.mxu0 0.0
  %140 = vmatpush1.msra.mxu0 0.0
  %141 = vmatprep.subr.mxu0 0.0
  %142 = vmatpush1.msra.mxu0 0.0
  %143 = vmatprep.subr.mxu0 0.0
  %144 = vmatpush1.msra.mxu0 0.0
  %145 = vmatprep.subr.mxu0 0.0
  %146 = vmatpush1.msra.mxu0 0.0
  %147 = vmatprep.subr.mxu0 0.0
  %148 = vmatpush1.msra.mxu0 0.0
  %149 = vmatprep.subr.mxu0 0.0
  %150 = vmatpush1.msra.mxu0 0.0
  %151 = vmatprep.subr.mxu0 0.0
  %152 = vmatpush1.msra.mxu0 0.0
  %153 = vmatprep.subr.mxu0 0.0
  %154 = vmatpush1.msra.mxu0 0.0
  %155 = vmatprep.subr.mxu0 0.0
  %156 = vmatpush1.msra.mxu0 0.0
  %157 = vmatprep.subr.mxu0 0.0
  %158 = vmatpush1.msra.mxu0 0.0
  %159 = vmatprep.subr.mxu0 0.0
  %160 = vmatpush1.msra.mxu0 0.0
  %161 = vmatprep.subr.mxu0 0.0
  %162 = vmatpush1.msra.mxu0 0.0
  %163 = vmatprep.subr.mxu0 0.0
  %164 = vmatpush1.msra.mxu0 0.0
  %165 = vmatprep.subr.mxu0 0.0
  %166 = vmatpush1.msra.mxu0 0.0
  %167 = vmatprep.subr.mxu0 0.0
  %168 = vmatpush1.msra.mxu0 0.0
  %169 = vmatprep.subr.mxu0 0.0
  %170 = vmatpush1.msra.mxu0 0.0
  %171 = vmatprep.subr.mxu0 0.0
  %172 = vmatpush1.msra.mxu0 0.0
  %173 = vmatprep.subr.mxu0 0.0
  %174 = vmatpush1.msra.mxu0 0.0
  %175 = vmatprep.subr.mxu0 0.0
  %176 = vmatpush1.msra.mxu0 0.0
  %177 = vmatprep.subr.mxu0 0.0
  %178 = vmatpush1.msra.mxu0 0.0
  %179 = vmatprep.subr.mxu0 0.0
  %180 = vmatpush1.msra.mxu0 0.0
  %181 = vmatprep.subr.mxu0 0.0
  %182 = vmatpush1.msra.mxu0 0.0
  %183 = vmatprep.mubr.f32.mxu0 0.0
  %184 = vmatmul.mubr.f32.gmra.mrb[0].mxu0 %v114
  %v185 = vpop.f32.mrb[0].mxu0
  %v186 = vadd.f32 0.0, %v185
  %v187 = vpop.f32.mrb[0].mxu0
  %188 = vmatprep.mubr.f32.mxu0 0.0
  %189 = vmatmul.mubr.f32.gmra.mrb[0].mxu0 %v117
  %v190 = vpop.f32.mrb[0].mxu0
  %v191 = vadd.f32 0.0, %v190
  %v192 = vpop.f32.mrb[0].mxu0
  %193 = vdwg.mxu0
  %v194 = vld [vmem:[#allocation2] sm:$0x1]
  %v196 = vlaneseq
  %v197 = vshrl.u32 %v196, 7
  %v198 = vsub.s32 0, %v197
  %v199 = vrot.slane %v194, %v198
  %v201 = vadd.f32 %v99, %v199
  %v202 = vadd.f32 %v104, %v199
  %v203 = vmul.f32 %v99, %v99
  %v204 = vmul.f32 %v104, %v104
  %207 = vrot.lane.b32.xlu0 %v203, 127
  %v208 = vpop.permute.xlu0 %207
  %209 = vrot.lane.b32.xlu0 %v204, 127
  %v210 = vpop.permute.xlu0 %209
  %vm213 = vcmask 64512
  %v214 = vsel %vm213, %v208, 0.0
  %215 = vadd.xlane.f32.xlu0 %v214
  %v216 = vpop.xlane.xlu0 %215
  %v217 = vsel %vm213, %v210, 0.0
  %218 = vadd.xlane.f32.xlu0 %v217
  %v219 = vpop.xlane.xlu0 %218
  %v220 = vmul.f32 %v216, 0.5
  %v221 = vmul.f32 %v219, 0.5
  %v222 = vadd.f32 %v201, %v220
  %v223 = vadd.f32 %v202, %v221
  %v224 = vadd.f32 %v222, %v186
  %v225 = vadd.f32 %v223, %v191
  %vm226 = vcmask 7168
  %227 = vst.msk [vmem:[%s4] sm:$0xff] %vm226, %v224
  %228 = vst.msk [vmem:[%s4 + $0x8] sm:$0xff] %vm226, %v225
  // Predicated region
  $region18: #{tpu_custom_call.1} parent=0 // pred_check
    _
  $region19: #{tpu_custom_call.1} parent=0 // pred_check_branch
    %230 = sbr.rel (0) target = $region21
  $region20: #{tpu_custom_call.1} parent=0 // pred_region
    _
  $region21: #{tpu_custom_call.1} parent=0 // pred_fallthru
    _
  // Predicated region
  $region22: #{tpu_custom_call.1} parent=0 // pred_check
    _
  $region23: #{tpu_custom_call.1} parent=0 // pred_check_branch
    %232 = sbr.rel (0) target = $region25
  $region24: #{tpu_custom_call.1} parent=0 // pred_region
    _
  $region25: #{tpu_custom_call.1} parent=0 // pred_fallthru
    _

</llo_original>
